<compile_context>
chip_gen: v7x
topology: tpu7x:2x2x1
jax: 0.10.0
libtpu: 0.0.40
codegen_flags: <defaults>
</compile_context>

<pallas_src>
import functools

import jax
import jax.numpy as jnp
from jax import lax
from jax.experimental import pallas as pl
from jax.experimental.pallas import tpu as pltpu


def _round_up(x, m):
    return (x + m - 1) // m * m


def _patch_proj_kernel(x_ref, w_ref, b_ref, o_ref):
    # x_ref: (TM, Kp)  activation tile (compute dtype, e.g. bf16)
    # w_ref: (Kp, TN)  projection weight tile (VMEM-resident when n_tiles == 1)
    # b_ref: (1,  TN)  f32 bias tile
    # o_ref: (TM, TN)  output tile
    acc = jnp.dot(x_ref[...], w_ref[...], preferred_element_type=jnp.float32)
    o_ref[...] = (acc + b_ref[...]).astype(o_ref.dtype)


def patch_embedding_forward(x, weight, bias, patch_size, *,
                            compute_dtype=jnp.bfloat16,
                            out_dtype=None,
                            block_m=1024,
                            block_n=2048):
    """x: [B, C, H, W] (NCHW). weight: [d_model, C, p, p]. bias: [d_model].

    Returns [B, (H//p)*(W//p), d_model], matching the PyTorch module
    (Conv2d(stride=kernel=p) -> view(B, C, H'*W') -> permute(0, 2, 1)).
    """
    B, C, H, W = x.shape
    p = patch_size
    if H % p != 0 or W % p != 0:
        raise ValueError(f"H={H}, W={W} must be divisible by patch_size={p}")

    d_model = weight.shape[0]
    Hp, Wp = H // p, W // p
    N = Hp * Wp
    K = C * p * p
    M = B * N

    if compute_dtype is None:
        compute_dtype = x.dtype
    if out_dtype is None:
        out_dtype = x.dtype
    cbytes = jnp.dtype(compute_dtype).itemsize
    obytes = jnp.dtype(out_dtype).itemsize

    # ---- lane / contraction padding -------------------------------------
    # Kp: dense MXU contraction + unmasked vld on the activation tile.
    Kp = _round_up(K, 128)
    # Dp: lane-dense output stores. Tile over d_model only when it is so large
    # that a full-Dp resident weight would blow the v7x/v5e VMEM budget.
    d128 = _round_up(d_model, 128)
    if d128 <= block_n:
        TN = Dp = d128
        n_tiles = 1
    else:
        TN = _round_up(block_n, 256)          # feed both 256-wide MXUs
        Dp = _round_up(d_model, TN)
        n_tiles = Dp // TN

    # M tiling: multiple of 16 for bf16 sublane packing (8 otherwise); ragged
    # last tile handled by Pallas (no jnp.pad over M).
    tm_mult = 16 if cbytes == 2 else 8
    TM = _round_up(min(block_m, _round_up(M, tm_mult)), tm_mult)
    m_tiles = pl.cdiv(M, TM)

    # ---- patch extraction glue (cast first; folds under jit / input DMA) ----
    # Feature order (c, kh, kw) matches PyTorch Conv2d weight layout [out,in,kh,kw].
    xp = x.astype(compute_dtype).reshape(B, C, Hp, p, Wp, p)
    xp = jnp.transpose(xp, (0, 2, 4, 1, 3, 5))          # [B, Hp, Wp, C, p, p]
    xp = xp.reshape(M, K)                                # [M, K]
    if Kp != K:
        xp = jnp.pad(xp, ((0, 0), (0, Kp - K)))          # zero K-pad: neutral

    # ---- weight / bias prep (O(K*d_model), once under jit) ----
    w_mat = weight.reshape(d_model, K).astype(compute_dtype)
    w_mat = jnp.pad(w_mat, ((0, Dp - d_model), (0, Kp - K))).T      # [Kp, Dp]
    b_mat = jnp.pad(bias.astype(jnp.float32), (0, Dp - d_model)).reshape(1, Dp)

    # Grid-invariant operands: single-buffer them (no wasted VMEM / prologue DMA).
    const_mode = pl.Buffered(1) if n_tiles == 1 else None
    w_bufs = 1 if n_tiles == 1 else 2

    vmem_need = (2 * TM * Kp * cbytes                # double-buffered x tiles
                 + w_bufs * Kp * TN * cbytes         # weight
                 + w_bufs * 8 * TN * 4               # bias (sublane-padded)
                 + 2 * TM * TN * obytes)             # double-buffered out tiles
    vmem_limit = int(min(max(int(vmem_need * 1.3) + (2 << 20), 32 << 20), 120 << 20))

    cost = pl.CostEstimate(
        flops=2 * M * Kp * Dp,
        transcendentals=0,
        bytes_accessed=M * Kp * cbytes + Kp * Dp * cbytes + Dp * 4 + M * Dp * obytes,
    )

    out = pl.pallas_call(
        _patch_proj_kernel,
        out_shape=jax.ShapeDtypeStruct((M, Dp), out_dtype),
        # N outer / M inner: weight block index changes only when j changes,
        # so the weight is DMA'd from HBM exactly once overall.
        grid=(n_tiles, m_tiles),
        in_specs=[
            pl.BlockSpec((TM, Kp), lambda j, i: (i, 0)),                          # streamed rows
            pl.BlockSpec((Kp, TN), lambda j, i: (0, j), pipeline_mode=const_mode),  # weight
            pl.BlockSpec((1, TN), lambda j, i: (0, j), pipeline_mode=const_mode),   # bias
        ],
        out_specs=pl.BlockSpec((TM, TN), lambda j, i: (i, j)),
        compiler_params=pltpu.CompilerParams(
            dimension_semantics=("parallel", "parallel"),
            # Let XLA fuse the patch-extraction transpose/cast into the
            # activation input DMA (avoids an extra full HBM pass).
            allow_input_fusion=[True, False, False],
            vmem_limit_bytes=vmem_limit,
        ),
        cost_estimate=cost,
    )(xp, w_mat, b_mat)

    if Dp != d_model:
        out = out[:, :d_model]                           # drop lane padding only
    return out.reshape(B, N, d_model)


if __name__ == "__main__":
    # Small shapes consistent with the module. H=W=20 (divisible by patch 4)
    # gives M = 2*25 = 50 rows, so block_m=16 exercises a multi-tile grid with
    # a ragged (masked) final row tile, plus K (64->128) and d_model (32->128)
    # padding paths.
    B, C, H, W = 2, 4, 20, 20
    patch_size = 4
    d_model = 32

    key = jax.random.PRNGKey(0)
    kx, kw, kb = jax.random.split(key, 3)
    x = jax.random.normal(kx, (B, C, H, W), dtype=jnp.float32)
    # Deterministic synthetic parameters (Conv2d weight [out, in, kh, kw], bias [out]).
    weight = jax.random.normal(kw, (d_model, C, patch_size, patch_size),
                               dtype=jnp.float32) * 0.05
    bias = jax.random.normal(kb, (d_model,), dtype=jnp.float32) * 0.05

    fwd = jax.jit(functools.partial(patch_embedding_forward,
                                    patch_size=patch_size, block_m=16))
    out = jax.block_until_ready(fwd(x, weight, bias))

    # Reference: strided conv via lax, then flatten + permute (as PyTorch does).
    ref = lax.conv_general_dilated(
        x, weight,
        window_strides=(patch_size, patch_size),
        padding="VALID",
        dimension_numbers=("NCHW", "OIHW", "NCHW"),
    ) + bias[None, :, None, None]
    Bc, Cc, Hc, Wc = ref.shape
    ref = jnp.transpose(ref.reshape(Bc, Cc, Hc * Wc), (0, 2, 1))

    assert out.shape == ref.shape == (B, (H // patch_size) * (W // patch_size), d_model)
    # bf16 MXU inputs with f32 accumulation -> looser tolerance than pure f32.
    assert jnp.allclose(out, ref, atol=2e-2, rtol=2e-2)
    print("KERNEL_OK")
</pallas_src>

<mosaic_0001>
module attributes {stable_mosaic.version = 11 : i64} {
  func.func @_patch_proj_kernel(%arg0: i32, %arg1: i32, %arg2: memref<16x128xbf16, #tpu.memory_space<vmem>>, %arg3: memref<128x128xbf16, #tpu.memory_space<vmem>>, %arg4: memref<1x128xf32, #tpu.memory_space<vmem>>, %arg5: memref<16x128xf32, #tpu.memory_space<vmem>>) attributes {dimension_semantics = [#tpu.dimension_semantics<parallel>, #tpu.dimension_semantics<parallel>], iteration_bounds = array<i64: 1, 4>, scalar_prefetch = 0 : i64, scratch_operands = 0 : i64, tpu.core_type = #tpu.core_type<tc>, window_params = [{transform_indices = @transform_0, window_bounds = array<i64: 16, 128>}, {pipeline_mode = #tpu.pipeline_mode<synchronous>, transform_indices = @transform_1, window_bounds = array<i64: 128, 128>}, {pipeline_mode = #tpu.pipeline_mode<synchronous>, transform_indices = @transform_2, window_bounds = array<i64: 1, 128>}, {transform_indices = @transform_3, window_bounds = array<i64: 16, 128>}]} {
    %c0 = arith.constant 0 : index
    %c0_0 = arith.constant 0 : index
    %0 = vector.load %arg2[%c0, %c0_0] : memref<16x128xbf16, #tpu.memory_space<vmem>>, vector<16x128xbf16>
    %c0_1 = arith.constant 0 : index
    %c0_2 = arith.constant 0 : index
    %1 = vector.load %arg3[%c0_1, %c0_2] : memref<128x128xbf16, #tpu.memory_space<vmem>>, vector<128x128xbf16>
    %cst = arith.constant dense<0.000000e+00> : vector<16x128xf32>
    %2 = tpu.matmul %0, %1, %cst {dimension_numbers = #tpu.dot_dimension_numbers<[1], [0], [0], [1], [0, 0, 1, 1], [], []>} : vector<16x128xbf16>, vector<128x128xbf16>, vector<16x128xf32> -> vector<16x128xf32>
    %c0_3 = arith.constant 0 : index
    %c0_4 = arith.constant 0 : index
    %3 = vector.load %arg4[%c0_3, %c0_4] : memref<1x128xf32, #tpu.memory_space<vmem>>, vector<1x128xf32>
    %4 = vector.broadcast %3 : vector<1x128xf32> to vector<16x128xf32>
    %5 = arith.addf %2, %4 : vector<16x128xf32>
    %c0_5 = arith.constant 0 : index
    %c0_6 = arith.constant 0 : index
    %6 = vector.load %arg5[%c0_5, %c0_6] : memref<16x128xf32, #tpu.memory_space<vmem>>, vector<16x128xf32>
    tpu.vector_store %arg5[%c0_5, %c0_6], %5 {strides = array<i32>} : memref<16x128xf32, #tpu.memory_space<vmem>>, vector<16x128xf32>,
    return
  }
  func.func @transform_0(%arg0: i32, %arg1: i32) -> (i32, i32) {
    %c0_i32 = arith.constant 0 : i32
    %c0_i32_0 = arith.constant 0 : i32
    return %arg1, %c0_i32 : i32, i32
  }
  func.func @transform_1(%arg0: i32, %arg1: i32) -> (i32, i32) {
    %c0_i32 = arith.constant 0 : i32
    %c0_i32_0 = arith.constant 0 : i32
    return %c0_i32, %arg0 : i32, i32
  }
  func.func @transform_2(%arg0: i32, %arg1: i32) -> (i32, i32) {
    %c0_i32 = arith.constant 0 : i32
    %c0_i32_0 = arith.constant 0 : i32
    return %c0_i32, %arg0 : i32, i32
  }
  func.func @transform_3(%arg0: i32, %arg1: i32) -> (i32, i32) {
    %c0_i32 = arith.constant 0 : i32
    return %arg1, %arg0 : i32, i32
  }
}

</mosaic_0001>

<llo_original>
// kernel: patch_embedding_forward.2
$region0: #{patch_embedding_forward.2}
  #allocation0 [shape = 'u32[]', space=smem, size = 0x4, offset = 0x4, fixed_abs, tag = 'smem constant byte address 0x4 - core index']
  #allocation1 [shape = 'u32[144,128]{1,0:T(1,128)}', space=vmem, size = 0x12000, scoped, tag = 'internal scratch']
  #allocation2 [shape = 'u32[2048]{0}', space=vmem, size = 0x2000, scoped, tag = 'scoped memory for patch_embedding_forward.2']
  #allocation3 [shape = 'u32[2048]{0}', space=vmem, size = 0x2000, scoped, tag = 'scoped memory for patch_embedding_forward.2']
  #allocation4 [shape = 'u32[2048]{0}', space=vmem, size = 0x2000, scoped, tag = 'scoped memory for patch_embedding_forward.2']
  #allocation5 [shape = 'u32[2048]{0}', space=vmem, size = 0x2000, scoped, tag = 'scoped memory for patch_embedding_forward.2']
  #allocation6 [shape = 'u32[2048]{0}', space=vmem, size = 0x2000, scoped, tag = 'scoped memory for patch_embedding_forward.2']
  %s0 = inlined_call_operand.vmem [shape: bf16[128,128], index: 0, kind: input, shape index: {}]
  %s1 = inlined_call_operand.vmem [shape: f32[1,128], index: 1, kind: input, shape index: {}]
  %s2 = inlined_call_operand.vmem [shape: bf16[50,64], index: 2, kind: input, shape index: {}]
  %s3 = inlined_call_operand.<no memory space> [shape: bf16[], index: 3, kind: input, shape index: {}]
  %s4 = inlined_call_operand.vmem [shape: f32[50,128], index: 4, kind: output, shape index: {}]
  %s5 = sld [smem:[#allocation0]]
  $region93: #{patch_embedding_forward.2} parent=0
    _
  %s7 = ssub.s32 1, %s5
  %s8 = scalar_select 0, %s7, %s5
  %v9 = vstv %s3
  %v10 = vunpack.i.l.bf16 %v9
  %v12 = vunpack.i.h.bf16 %v9
  $region1: #{patch_embedding_forward.2} parent=0
    #allocation7 [shape = 'u8[16384]{0}', space=vmem, size = 0x4000, scoped, tag = 'output window, operand 0']
    loop: start=0, step=1, limit=6
    $region2: #{patch_embedding_forward.2} parent=1 // loop_pre_header
      _
    $region3: #{patch_embedding_forward.2} parent=1 // loop_header
      %s15 = sphi 0, %s19
      %p16 = scmp.ge.s32.totalorder %s15, 6
      %s22 = sphi 0, %s34
      %s23 = sphi 0, %s30
      %s24 = sphi 0, %s22
      %s25 = sphi 0, %s23
      %s26 = sphi 0, %s24
      %s27 = sphi 0, %s25
      %s37 = sphi 0, %s39
      %s40 = sphi 0, %s37
      %s41 = sphi 0, %s40
      %s57 = sphi 0, %s41
      %s63 = sphi 0, %s65
      %s66 = sphi 0, %s63
      %s67 = sphi 0, %s66
      %s83 = sphi 0, %s67
      %s89 = sphi 0, %s91
      %s92 = sphi 0, %s89
      %s93 = sphi 0, %s92
      %s109 = sphi 0, %s93
      %s117 = sphi 0, %s119
      %s120 = sphi 0, %s117
      %s121 = sphi 0, %s120
      %s137 = sphi 0, %s121
    $region4: #{patch_embedding_forward.2} parent=1 // loop_header_branch
      %18 = sbr.rel (%p16) target = $region8
    $region5: #{patch_embedding_forward.2} parent=1 // loop_body
      %s20 = ssub.s32 %s15, 1
      %s21 = ssub.s32 %s15, 2
      %s28 = sadd.s32 1, %s23
      %p29 = scmp.ge.s32.totalorder %s28, 4
      %s30 = scalar_select %p29, 0, %s28
      %s31 = sadd.s32 1, %s22
      %s32 = scalar_select %p29, %s31, %s22
      %p33 = scmp.ge.s32.totalorder %s32, 1
      %s34 = scalar_select %p33, 0, %s32
      %s35 = ssub.s32 %s23, %s30
      %p36 = scmp.eq.s32.totalorder %s35, 0
      %s38 = sadd.s32 %s37, 1
      %s39 = scalar_select %p36, %s37, %s38
      %p42 = pneg %p36
      %p43 = scmp.eq.s32.totalorder %s15, 3
      %p44 = por %p42, %p43
      %p45 = scmp.ne.s32.totalorder %s37, %s40
      %p46 = scmp.eq.s32.totalorder %s15, 0
      %p47 = por %p45, %p46
      %p48 = scmp.ne.s32.totalorder %s37, %s40
      %p49 = scmp.eq.s32.totalorder %s20, 3
      %p50 = por %p48, %p49
      %p51 = scmp.ne.s32.totalorder %s40, %s41
      %p52 = scmp.eq.s32.totalorder %s20, 0
      %p53 = por %p51, %p52
      %p54 = scmp.ne.s32.totalorder %s40, %s41
      %p55 = scmp.eq.s32.totalorder %s21, 3
      %p56 = por %p54, %p55
      %p58 = scmp.ne.s32.totalorder %s41, %s57
      %p59 = scmp.eq.s32.totalorder %s21, 0
      %p60 = por %p58, %p59
      %s61 = ssub.s32 %s22, %s34
      %p62 = scmp.eq.s32.totalorder %s61, 0
      %s64 = sadd.s32 %s63, 1
      %s65 = scalar_select %p62, %s63, %s64
      %p68 = pneg %p62
      %p69 = scmp.eq.s32.totalorder %s15, 3
      %p70 = por %p68, %p69
      %p71 = scmp.ne.s32.totalorder %s63, %s66
      %p72 = scmp.eq.s32.totalorder %s15, 0
      %p73 = por %p71, %p72
      %p74 = scmp.ne.s32.totalorder %s63, %s66
      %p75 = scmp.eq.s32.totalorder %s20, 3
      %p76 = por %p74, %p75
      %p77 = scmp.ne.s32.totalorder %s66, %s67
      %p78 = scmp.eq.s32.totalorder %s20, 0
      %p79 = por %p77, %p78
      %p80 = scmp.ne.s32.totalorder %s66, %s67
      %p81 = scmp.eq.s32.totalorder %s21, 3
      %p82 = por %p80, %p81
      %p84 = scmp.ne.s32.totalorder %s67, %s83
      %p85 = scmp.eq.s32.totalorder %s21, 0
      %p86 = por %p84, %p85
      %s87 = ssub.s32 %s22, %s34
      %p88 = scmp.eq.s32.totalorder %s87, 0
      %s90 = sadd.s32 %s89, 1
      %s91 = scalar_select %p88, %s89, %s90
      %p94 = pneg %p88
      %p95 = scmp.eq.s32.totalorder %s15, 3
      %p96 = por %p94, %p95
      %p97 = scmp.ne.s32.totalorder %s89, %s92
      %p98 = scmp.eq.s32.totalorder %s15, 0
      %p99 = por %p97, %p98
      %p100 = scmp.ne.s32.totalorder %s89, %s92
      %p101 = scmp.eq.s32.totalorder %s20, 3
      %p102 = por %p100, %p101
      %p103 = scmp.ne.s32.totalorder %s92, %s93
      %p104 = scmp.eq.s32.totalorder %s20, 0
      %p105 = por %p103, %p104
      %p106 = scmp.ne.s32.totalorder %s92, %s93
      %p107 = scmp.eq.s32.totalorder %s21, 3
      %p108 = por %p106, %p107
      %p110 = scmp.ne.s32.totalorder %s93, %s109
      %p111 = scmp.eq.s32.totalorder %s21, 0
      %p112 = por %p110, %p111
      %s113 = ssub.s32 %s23, %s30
      %s114 = ssub.s32 %s22, %s34
      %s115 = sor.u32 %s113, %s114
      %p116 = scmp.eq.s32.totalorder %s115, 0
      %s118 = sadd.s32 %s117, 1
      %s119 = scalar_select %p116, %s117, %s118
      %p122 = pneg %p116
      %p123 = scmp.eq.s32.totalorder %s15, 3
      %p124 = por %p122, %p123
      %p125 = scmp.ne.s32.totalorder %s117, %s120
      %p126 = scmp.eq.s32.totalorder %s15, 0
      %p127 = por %p125, %p126
      %p128 = scmp.ne.s32.totalorder %s117, %s120
      %p129 = scmp.eq.s32.totalorder %s20, 3
      %p130 = por %p128, %p129
      %p131 = scmp.ne.s32.totalorder %s120, %s121
      %p132 = scmp.eq.s32.totalorder %s20, 0
      %p133 = por %p131, %p132
      %p134 = scmp.ne.s32.totalorder %s120, %s121
      %p135 = scmp.eq.s32.totalorder %s21, 3
      %p136 = por %p134, %p135
      %p138 = scmp.ne.s32.totalorder %s121, %s137
      %p139 = scmp.eq.s32.totalorder %s21, 0
      %p140 = por %p138, %p139
      %p141 = scmp.le.s32.totalorder 1, %s15
      %p142 = scmp.lt.s32.totalorder %s15, 5
      %p143 = pnand %p141, %p142
      %p144 = pneg %p143
      // Predicated region
      $region9: #{patch_embedding_forward.2} parent=5 // pred_check
        _
      $region10: #{patch_embedding_forward.2} parent=5 // pred_check_branch
        %146 = sbr.rel (%p143) target = $region12
      $region11: #{patch_embedding_forward.2} parent=5 // pred_region
        %s147 = ssub.s32 %s15, 1
        // Predicated region
        $region13: #{patch_embedding_forward.2} parent=11 // pred_check
          %p148 = pneg %p79
        $region14: #{patch_embedding_forward.2} parent=11 // pred_check_branch
          %150 = sbr.rel (%p148) target = $region16
        $region15: #{patch_embedding_forward.2} parent=11 // pred_region
          %p151 = scmp.lt.s32.totalorder %s24, 0
          %s152 = scalar_select %p151, %s24, 0
          %s153 = smul.addr %s152, 4
          %s154 = scalar_lea.vmem %s0, %s153
        $region16: #{patch_embedding_forward.2} parent=11 // pred_fallthru
          _
        // Predicated region
        $region17: #{patch_embedding_forward.2} parent=11 // pred_check
          %p155 = pneg %p105
        $region18: #{patch_embedding_forward.2} parent=11 // pred_check_branch
          %157 = sbr.rel (%p155) target = $region20
        $region19: #{patch_embedding_forward.2} parent=11 // pred_region
          %p158 = scmp.lt.s32.totalorder %s24, 0
          %s159 = scalar_select %p158, %s24, 0
          %s160 = scalar_lea.vmem %s1, %s159
        $region20: #{patch_embedding_forward.2} parent=11 // pred_fallthru
          _
      $region12: #{patch_embedding_forward.2} parent=5 // pred_fallthru
        _
      %p161 = scmp.lt.s32.totalorder %s15, 4
      // Predicated region
      $region21: #{patch_embedding_forward.2} parent=5 // pred_check
        %p162 = pneg %p161
      $region22: #{patch_embedding_forward.2} parent=5 // pred_check_branch
        %164 = sbr.rel (%p162) target = $region24
      $region23: #{patch_embedding_forward.2} parent=5 // pred_region
        // Predicated region
        $region25: #{patch_embedding_forward.2} parent=23 // pred_check
          %p165 = pneg %p47
        $region26: #{patch_embedding_forward.2} parent=23 // pred_check_branch
          %167 = sbr.rel (%p165) target = $region28
        $region27: #{patch_embedding_forward.2} parent=23 // pred_region
          %s168 = smul.u32 2, %s23
          %s169 = ssub.s32 7, %s168
          %p170 = scmp.lt.s32.totalorder %s169, 2
          %s171 = scalar_select %p170, %s169, 2
          %s172 = smul.u32 64, %s171
          %p173 = scmp.lt.s32.totalorder %s168, 6
          %s174 = scalar_select %p173, %s168, 6
          %s175 = smul.addr %s174, 4
          %s176 = scalar_lea.vmem %s2, %s175
          %s177 = smul.u32 2, %s23
          %s178 = ssub.s32 7, %s177
          %p179 = scmp.lt.s32.totalorder %s178, 2
          %s180 = scalar_select %p179, %s178, 2
          %s181 = smul.u32 64, %s180
        $region28: #{patch_embedding_forward.2} parent=23 // pred_fallthru
          _
      $region24: #{patch_embedding_forward.2} parent=5 // pred_fallthru
        _
      %p182 = scmp.le.s32.totalorder 1, %s15
      %p183 = scmp.lt.s32.totalorder %s15, 5
      %p184 = pnand %p182, %p183
      %p185 = pneg %p184
      // Predicated region
      $region29: #{patch_embedding_forward.2} parent=5 // pred_check
        _
      $region30: #{patch_embedding_forward.2} parent=5 // pred_check_branch
        %187 = sbr.rel (%p184) target = $region32
      $region31: #{patch_embedding_forward.2} parent=5 // pred_region
        #allocation8 [shape = 'u8[4096]{0}', space=vmem, size = 0x1000, dematerialized = true, scoped, tag = 'FusionAdapter Buffer %fusion.1 = bf16[50,128]{1,0:T(8,128)(2,1)} fusion(%param_2.1, %param_3), kind=kLoop, calls=%fused_computation.2.clone, metadata={op_name="jit(patch_embedding_forward)/jit(_pad)/pad" stack_frame_id=10}']
        %s188 = ssub.s32 %s15, 1
        %s189 = smul.u32 2, %s25
        %s190 = ssub.s32 7, %s189
        %p191 = scmp.lt.s32.totalorder %s190, 2
        %s192 = scalar_select %p191, %s190, 2
        %s193 = smul.u32 64, %s192
        %p194 = scmp.lt.s32.totalorder %s189, 6
        %s195 = scalar_select %p194, %s189, 6
        %s196 = smul.addr %s195, 4
        %s197 = scalar_lea.vmem %s2, %s196
        %p198 = pneg %p53
        %p199 = pneg %p50
        %p200 = scmp.lt.s32.totalorder %s24, 0
        %s201 = scalar_select %p200, %s24, 0
        %s202 = smul.addr %s201, 4
        %s203 = scalar_lea.vmem %s0, %s202
        %p204 = pneg %p79
        %p205 = pneg %p76
        %p206 = scmp.lt.s32.totalorder %s24, 0
        %s207 = scalar_select %p206, %s24, 0
        %s208 = scalar_lea.vmem %s1, %s207
        %p209 = pneg %p105
        %p210 = pneg %p102
        %p211 = pneg %p133
        %p212 = pneg %p130
        %s213 = sand.u32 %s120, 1
        %s214 = sand.u32 %s120, 1
        %s215 = smul.addr %s214, 16
        %s216 = scalar_lea.vmem [#allocation7], %s215
        %s217 = smul.u32 2, %s25
        %s218 = ssub.s32 7, %s217
        %p219 = scmp.lt.s32.totalorder %s218, 2
        %s220 = scalar_select %p219, %s218, 2
        %s221 = smul.u32 64, %s220
        %p222 = scmp.lt.s32.totalorder %s217, 6
        %s223 = scalar_select %p222, %s217, 6
        %s224 = smul.addr %s223, 4
        %s225 = scalar_lea.vmem %s2, %s224
        %s226 = smul.u32 2, %s25
        %s227 = ssub.s32 7, %s226
        %p228 = scmp.lt.s32.totalorder %s227, 2
        %s229 = scalar_select %p228, %s227, 2
        %s230 = smul.u32 64, %s229
        %p231 = scmp.lt.s32.totalorder %s24, 0
        %s232 = scalar_select %p231, %s24, 0
        %s233 = smul.addr %s232, 4
        %s234 = scalar_lea.vmem %s0, %s233
        %p235 = scmp.lt.s32.totalorder %s24, 0
        %s236 = scalar_select %p235, %s24, 0
        %s237 = scalar_lea.vmem %s1, %s236
        %s238 = smul.u32 2, %s25
        %s239 = ssub.s32 7, %s238
        %p240 = scmp.lt.s32.totalorder %s239, 2
        %s241 = scalar_select %p240, %s239, 2
        %s242 = smul.u32 128, %s241
        %s244 = sor.u32 255, 127
        %s245 = sand.u32 %s244, 85
        %s246 = sshrl.u32 %s245, 1
        %s247 = sor.u32 %s245, %s246
        %s248 = sand.u32 51, %s247
        %s249 = sshrl.u32 %s248, 2
        %s250 = sor.u32 %s248, %s249
        %s251 = sand.u32 15, %s250
        %v252 = vld [vmem:[%s225] sm:%s251]
        %v253 = vunpack.c.l.bf16 %v252
        %v254 = vunpack.c.h.bf16 %v252
        %s255 = smul.addr %s226, 8
        %v256 = vlaneseq
        %v257 = vshrl.u32 %v256, 7
        %v258 = vstv %s255
        %v259 = vadd.s32 %v257, %v258
        %vm260 = vcmp.lt.s32.totalorder %v259, 50
        %v261 = vsel %vm260, %v253, %v10
        %v262 = vlaneseq
        %v263 = vand.u32 %v262, 127
        %vm265 = vcmp.lt.s32.totalorder %v263, 64
        %v266 = vsel %vm265, %v261, %v10
        %v267 = vpack.c.bf16 0.0, %v266
        %269 = vst [vmem:[#allocation8] sm:$0xf] %v267
        %s270 = scalar_lea.vmem %s225, 4
        %s271 = sadd.s32 %s226, 1
        %s272 = ssub.s32 6, %s271
        %p273 = scmp.lt.s32.totalorder %s272, 0
        %s274 = scalar_select %p273, 0, 255
        %s275 = sshrl.u32 %s274, 1
        %s276 = sor.u32 %s274, %s275
        %s277 = sand.u32 %s276, 85
        %s278 = sshrl.u32 %s277, 1
        %s279 = sor.u32 %s277, %s278
        %s280 = sand.u32 51, %s279
        %s281 = sshrl.u32 %s280, 2
        %s282 = sor.u32 %s280, %s281
        %s283 = sand.u32 15, %s282
        %v284 = vld [vmem:[%s270] sm:%s283]
        %v285 = vunpack.c.l.bf16 %v284
        %v286 = vunpack.c.h.bf16 %v284
        %s287 = sadd.s32 %s226, 1
        %s288 = ssub.s32 6, %s287
        %v289 = vstv %s288
        %vm290 = vcmp.lt.s32.totalorder %v289, 0
        %v291 = vsel %vm290, %v10, %v285
        %s292 = sadd.s32 %s226, 1
        %s293 = smul.addr %s292, 8
        %v294 = vlaneseq
        %v295 = vshrl.u32 %v294, 7
        %v296 = vstv %s293
        %v297 = vadd.s32 %v295, %v296
        %vm298 = vcmp.lt.s32.totalorder %v297, 50
        %v299 = vsel %vm298, %v291, %v10
        %v300 = vlaneseq
        %v301 = vand.u32 %v300, 127
        %vm303 = vcmp.lt.s32.totalorder %v301, 64
        %v304 = vsel %vm303, %v299, %v10
        %s305 = scalar_lea.vmem [#allocation8], 4
        %v306 = vpack.c.bf16 0.0, %v304
        %308 = vst [vmem:[%s305] sm:$0xf] %v306
        %v310 = vld [vmem:[#allocation8] sm:$0xf]
        %v311 = vld [vmem:[#allocation8 + $0x4] sm:$0xf]
        %v312 = vld [vmem:[%s234] sm:$0xf]
        %v313 = vld [vmem:[%s234 + $0x4] sm:$0xf]
        %v314 = vld [vmem:[%s234 + $0x8] sm:$0xf]
        %v315 = vld [vmem:[%s234 + $0xc] sm:$0xf]
        %v316 = vld [vmem:[%s234 + $0x10] sm:$0xf]
        %v317 = vld [vmem:[%s234 + $0x14] sm:$0xf]
        %v318 = vld [vmem:[%s234 + $0x18] sm:$0xf]
        %v319 = vld [vmem:[%s234 + $0x1c] sm:$0xf]
        %v320 = vld [vmem:[%s234 + $0x20] sm:$0xf]
        %v321 = vld [vmem:[%s234 + $0x24] sm:$0xf]
        %v322 = vld [vmem:[%s234 + $0x28] sm:$0xf]
        %v323 = vld [vmem:[%s234 + $0x2c] sm:$0xf]
        %v324 = vld [vmem:[%s234 + $0x30] sm:$0xf]
        %v325 = vld [vmem:[%s234 + $0x34] sm:$0xf]
        %v326 = vld [vmem:[%s234 + $0x38] sm:$0xf]
        %v327 = vld [vmem:[%s234 + $0x3c] sm:$0xf]
        %v328 = vld [vmem:[%s237] sm:$0x1]
        %v330 = vlaneseq
        %v331 = vshrl.u32 %v330, 7
        %v332 = vsub.s32 0, %v331
        %v333 = vrot.slane %v328, %v332
        %v337 = vunpack.c.l.b16 %v310
        %v338 = vunpack.c.l.b16 %v311
        %v339 = vpack.c.b16 %v338, %v337
        %v357 = vunpack.c.l.b16 %v312
        %v358 = vunpack.c.l.b16 %v313
        %v359 = vunpack.c.l.b16 %v314
        %v360 = vunpack.c.l.b16 %v315
        %v361 = vunpack.c.l.b16 %v316
        %v362 = vunpack.c.l.b16 %v317
        %v363 = vunpack.c.l.b16 %v318
        %v364 = vunpack.c.l.b16 %v319
        %v365 = vunpack.c.l.b16 %v320
        %v366 = vunpack.c.l.b16 %v321
        %v367 = vunpack.c.l.b16 %v322
        %v368 = vunpack.c.l.b16 %v323
        %v369 = vunpack.c.l.b16 %v324
        %v370 = vunpack.c.l.b16 %v325
        %v371 = vunpack.c.l.b16 %v326
        %v372 = vunpack.c.l.b16 %v327
        %v373 = vpack.c.b16 %v358, %v357
        %v374 = vpack.c.b16 %v360, %v359
        %v375 = vpack.c.b16 %v362, %v361
        %v376 = vpack.c.b16 %v364, %v363
        %v377 = vpack.c.b16 %v366, %v365
        %v378 = vpack.c.b16 %v368, %v367
        %v379 = vpack.c.b16 %v370, %v369
        %v380 = vpack.c.b16 %v372, %v371
        %389 = vmatprep.subr.bf16.mxu0 0
        %390 = vmatpush1.bf16.msra.mxu0 %v373
        %391 = vmatprep.subr.bf16.mxu0 0
        %392 = vmatpush1.bf16.msra.mxu0 %v374
        %393 = vmatprep.subr.bf16.mxu0 0
        %394 = vmatpush1.bf16.msra.mxu0 %v375
        %395 = vmatprep.subr.bf16.mxu0 0
        %396 = vmatpush1.bf16.msra.mxu0 %v376
        %397 = vmatprep.subr.bf16.mxu0 0
        %398 = vmatpush1.bf16.msra.mxu0 %v377
        %399 = vmatprep.subr.bf16.mxu0 0
        %400 = vmatpush1.bf16.msra.mxu0 %v378
        %401 = vmatprep.subr.bf16.mxu0 0
        %402 = vmatpush1.bf16.msra.mxu0 %v379
        %403 = vmatprep.subr.bf16.mxu0 0
        %404 = vmatpush1.bf16.msra.mxu0 %v380
        %405 = vmatprep.subr.bf16.mxu0 0
        %406 = vmatpush1.bf16.msra.mxu0 0
        %407 = vmatprep.subr.bf16.mxu0 0
        %408 = vmatpush1.bf16.msra.mxu0 0
        %409 = vmatprep.subr.bf16.mxu0 0
        %410 = vmatpush1.bf16.msra.mxu0 0
        %411 = vmatprep.subr.bf16.mxu0 0
        %412 = vmatpush1.bf16.msra.mxu0 0
        %413 = vmatprep.subr.bf16.mxu0 0
        %414 = vmatpush1.bf16.msra.mxu0 0
        %415 = vmatprep.subr.bf16.mxu0 0
        %416 = vmatpush1.bf16.msra.mxu0 0
        %417 = vmatprep.subr.bf16.mxu0 0
        %418 = vmatpush1.bf16.msra.mxu0 0
        %419 = vmatprep.subr.bf16.mxu0 0
        %420 = vmatpush1.bf16.msra.mxu0 0
        %421 = vmatprep.mubr.bf16.mxu0 0
        %422 = vmatmul.mubr.bf16.gmra.mrb[0].mxu0 %v339
        %v423 = vpop.f32.mrb[0].mxu0
        %v424 = vadd.f32 %v333, %v423
        %v425 = vpop.f32.mrb[0].mxu0
        %v426 = vpop.f32.mrb[0].mxu0
        %v427 = vadd.f32 %v333, %v426
        %v428 = vpop.f32.mrb[0].mxu0
        %429 = vdwg.mxu0
        %430 = vst [vmem:[%s216] sm:$0xff] %v424
        %431 = vst [vmem:[%s216 + $0x8] sm:$0xff] %v427
        %s432 = sand.u32 %s120, 1
        %s433 = sand.u32 %s120, 1
        %s434 = smul.addr %s433, 16
        %s435 = scalar_lea.vmem [#allocation7], %s434
        // Predicated region
        $region33: #{patch_embedding_forward.2} parent=31 // pred_check
          %p436 = pneg %p130
        $region34: #{patch_embedding_forward.2} parent=31 // pred_check_branch
          %438 = sbr.rel (%p436) target = $region36
        $region35: #{patch_embedding_forward.2} parent=31 // pred_region
          %s439 = smul.u32 2, %s25
          %s440 = ssub.s32 7, %s439
          %p441 = scmp.lt.s32.totalorder %s440, 2
          %s442 = scalar_select %p441, %s440, 2
          %s443 = smul.u32 128, %s442
          %p444 = scmp.ne.s32.totalorder 0, %s443
          %s445 = sadd.s32 %s24, %s439
          %s446 = smul.addr %s445, 8
          %s447 = scalar_lea.vmem %s4, %s446
          // Predicated region
          $region37: #{patch_embedding_forward.2} parent=35 // pred_check
            %p448 = pneg %p444
          $region38: #{patch_embedding_forward.2} parent=35 // pred_check_branch
            %450 = sbr.rel (%p448) target = $region40
          $region39: #{patch_embedding_forward.2} parent=35 // pred_region
            // Predicated region
            $region41: #{patch_embedding_forward.2} parent=39 // pred_check
              _
            $region42: #{patch_embedding_forward.2} parent=39 // pred_check_branch
              %452 = sbr.rel (0) target = $region44
            $region43: #{patch_embedding_forward.2} parent=39 // pred_region
              // Predicated region
              $region63: #{patch_embedding_forward.2} parent=43 // pred_check
                _
              $region64: #{patch_embedding_forward.2} parent=43 // pred_check_branch
                %503 = sbr.rel (0) target = $region66
              $region65: #{patch_embedding_forward.2} parent=43 // pred_region
                %s504 = sshrl.u32 %s442, 1
                // While loop
                $region67: #{patch_embedding_forward.2} parent=65 // loop_pre_header
                  _
                $region68: #{patch_embedding_forward.2} parent=65 // loop_header
                  %s506 = sphi 0, %s508
                  %p507 = scmp.ge.s32.totalorder %s506, %s504
                  %s511 = sphi 0, %s520
                  %s512 = sphi %s435, %s523
                  %s513 = sphi %s447, %s524
                $region69: #{patch_embedding_forward.2} parent=65 // loop_header_branch
                  %510 = sbr.rel (%p507) target = $region73
                $region70: #{patch_embedding_forward.2} parent=65 // loop_body
                  %v514 = vld [vmem:[%s512] sm:$0xff]
                  %515 = vst [vmem:[%s513] sm:$0xff] %v514
                  %v516 = vld [vmem:[%s512 + $0x8] sm:$0xff]
                  %517 = vst [vmem:[%s513 + $0x8] sm:$0xff] %v516
                  %s518 = sadd.s32 1, %s511
                  %p519 = scmp.ge.s32.totalorder %s518, %s504
                  %s520 = scalar_select %p519, 0, %s518
                  %s521 = smul.u32 %s520, 16
                  %s522 = smul.u32 %s520, 16
                  %s523 = scalar_lea.vmem %s435, %s521 [#allocation7]
                  %s524 = scalar_lea.vmem %s447, %s522
                $region71: #{patch_embedding_forward.2} parent=65 // loop_footer
                  %s508 = sadd.s32 %s506, 1
                $region72: #{patch_embedding_forward.2} parent=65 // loop_footer_branch
                  %505 = sbr.rel target = $region68
                $region73: #{patch_embedding_forward.2} parent=65 // loop_exit
                  _
                %s525 = sshrl.u32 %s442, 1
                %s526 = sand.u32 %s442, 1
                %s527 = smul.u32 %s525, 2
                %s528 = smul.u32 8, %s527
                %s529 = scalar_lea.vmem %s435, %s528 [#allocation7]
                %s530 = smul.u32 8, %s527
                %s531 = scalar_lea.vmem %s447, %s530
                // While loop
                $region74: #{patch_embedding_forward.2} parent=65 // loop_pre_header
                  _
                $region75: #{patch_embedding_forward.2} parent=65 // loop_header
                  %s533 = sphi 0, %s535
                  %p534 = scmp.ge.s32.totalorder %s533, %s526
                  %s538 = sphi 0, %s545
                  %s539 = sphi %s529, %s548
                  %s540 = sphi %s531, %s549
                $region76: #{patch_embedding_forward.2} parent=65 // loop_header_branch
                  %537 = sbr.rel (%p534) target = $region80
                $region77: #{patch_embedding_forward.2} parent=65 // loop_body
                  %v541 = vld [vmem:[%s539] sm:$0xff]
                  %542 = vst [vmem:[%s540] sm:$0xff] %v541
                  %s543 = sadd.s32 1, %s538
                  %p544 = scmp.ge.s32.totalorder %s543, %s526
                  %s545 = scalar_select %p544, 0, %s543
                  %s546 = smul.u32 %s545, 8
                  %s547 = smul.u32 %s545, 8
                  %s548 = scalar_lea.vmem %s529, %s546 [#allocation7]
                  %s549 = scalar_lea.vmem %s531, %s547
                $region78: #{patch_embedding_forward.2} parent=65 // loop_footer
                  %s535 = sadd.s32 %s533, 1
                $region79: #{patch_embedding_forward.2} parent=65 // loop_footer_branch
                  %532 = sbr.rel target = $region75
                $region80: #{patch_embedding_forward.2} parent=65 // loop_exit
                  _
              $region66: #{patch_embedding_forward.2} parent=43 // pred_fallthru
                _
              // Predicated region
              $region81: #{patch_embedding_forward.2} parent=43 // pred_check
                _
              $region82: #{patch_embedding_forward.2} parent=43 // pred_check_branch
                %551 = sbr.rel target = $region84
              $region83: #{patch_embedding_forward.2} parent=43 // pred_region
                _
              $region84: #{patch_embedding_forward.2} parent=43 // pred_fallthru
                _
            $region44: #{patch_embedding_forward.2} parent=39 // pred_fallthru
              _
            // Predicated region
            $region45: #{patch_embedding_forward.2} parent=39 // pred_check
              _
            $region46: #{patch_embedding_forward.2} parent=39 // pred_check_branch
              %454 = sbr.rel target = $region48
            $region47: #{patch_embedding_forward.2} parent=39 // pred_region
              %s456 = sshrl.u32 %s442, 1
              // While loop
              $region49: #{patch_embedding_forward.2} parent=47 // loop_pre_header
                _
              $region50: #{patch_embedding_forward.2} parent=47 // loop_header
                %s458 = sphi 0, %s460
                %p459 = scmp.ge.s32.totalorder %s458, %s456
                %s463 = sphi 0, %s472
                %s464 = sphi %s435, %s475
                %s465 = sphi %s447, %s476
              $region51: #{patch_embedding_forward.2} parent=47 // loop_header_branch
                %462 = sbr.rel (%p459) target = $region55
              $region52: #{patch_embedding_forward.2} parent=47 // loop_body
                %v466 = vld [vmem:[%s464] sm:$0xff]
                %467 = vst [vmem:[%s465] sm:$0xff] %v466
                %v468 = vld [vmem:[%s464 + $0x8] sm:$0xff]
                %469 = vst [vmem:[%s465 + $0x8] sm:$0xff] %v468
                %s470 = sadd.s32 1, %s463
                %p471 = scmp.ge.s32.totalorder %s470, %s456
                %s472 = scalar_select %p471, 0, %s470
                %s473 = smul.u32 %s472, 16
                %s474 = smul.u32 %s472, 16
                %s475 = scalar_lea.vmem %s435, %s473 [#allocation7]
                %s476 = scalar_lea.vmem %s447, %s474
              $region53: #{patch_embedding_forward.2} parent=47 // loop_footer
                %s460 = sadd.s32 %s458, 1
              $region54: #{patch_embedding_forward.2} parent=47 // loop_footer_branch
                %457 = sbr.rel target = $region50
              $region55: #{patch_embedding_forward.2} parent=47 // loop_exit
                _
              %s477 = sshrl.u32 %s442, 1
              %s478 = sand.u32 %s442, 1
              %s479 = smul.u32 %s477, 2
              %s480 = smul.u32 8, %s479
              %s481 = scalar_lea.vmem %s435, %s480 [#allocation7]
              %s482 = smul.u32 8, %s479
              %s483 = scalar_lea.vmem %s447, %s482
              // While loop
              $region56: #{patch_embedding_forward.2} parent=47 // loop_pre_header
                _
              $region57: #{patch_embedding_forward.2} parent=47 // loop_header
                %s485 = sphi 0, %s487
                %p486 = scmp.ge.s32.totalorder %s485, %s478
                %s490 = sphi 0, %s497
                %s491 = sphi %s481, %s500
                %s492 = sphi %s483, %s501
              $region58: #{patch_embedding_forward.2} parent=47 // loop_header_branch
                %489 = sbr.rel (%p486) target = $region62
              $region59: #{patch_embedding_forward.2} parent=47 // loop_body
                %v493 = vld [vmem:[%s491] sm:$0xff]
                %494 = vst [vmem:[%s492] sm:$0xff] %v493
                %s495 = sadd.s32 1, %s490
                %p496 = scmp.ge.s32.totalorder %s495, %s478
                %s497 = scalar_select %p496, 0, %s495
                %s498 = smul.u32 %s497, 8
                %s499 = smul.u32 %s497, 8
                %s500 = scalar_lea.vmem %s481, %s498 [#allocation7]
                %s501 = scalar_lea.vmem %s483, %s499
              $region60: #{patch_embedding_forward.2} parent=47 // loop_footer
                %s487 = sadd.s32 %s485, 1
              $region61: #{patch_embedding_forward.2} parent=47 // loop_footer_branch
                %484 = sbr.rel target = $region57
              $region62: #{patch_embedding_forward.2} parent=47 // loop_exit
                _
            $region48: #{patch_embedding_forward.2} parent=39 // pred_fallthru
              _
          $region40: #{patch_embedding_forward.2} parent=35 // pred_fallthru
            _
          %552 = vnop
        $region36: #{patch_embedding_forward.2} parent=31 // pred_fallthru
          _
      $region32: #{patch_embedding_forward.2} parent=5 // pred_fallthru
        _
      %p553 = scmp.le.s32.totalorder 2, %s15
      // Predicated region
      $region85: #{patch_embedding_forward.2} parent=5 // pred_check
        %p554 = pneg %p553
      $region86: #{patch_embedding_forward.2} parent=5 // pred_check_branch
        %556 = sbr.rel (%p554) target = $region88
      $region87: #{patch_embedding_forward.2} parent=5 // pred_region
        %s557 = ssub.s32 %s15, 2
        // Predicated region
        $region89: #{patch_embedding_forward.2} parent=87 // pred_check
          %p558 = pneg %p136
        $region90: #{patch_embedding_forward.2} parent=87 // pred_check_branch
          %560 = sbr.rel (%p558) target = $region92
        $region91: #{patch_embedding_forward.2} parent=87 // pred_region
          %s561 = sand.u32 %s121, 1
          %s562 = sand.u32 %s121, 1
          %s563 = smul.addr %s562, 16
          %s564 = scalar_lea.vmem [#allocation7], %s563
        $region92: #{patch_embedding_forward.2} parent=87 // pred_fallthru
          _
      $region88: #{patch_embedding_forward.2} parent=5 // pred_fallthru
        _
    $region6: #{patch_embedding_forward.2} parent=1 // loop_footer
      %s19 = sadd.s32 1, %s15
    $region7: #{patch_embedding_forward.2} parent=1 // loop_footer_branch
      %14 = sbr.rel target = $region3
    $region8: #{patch_embedding_forward.2} parent=1 // loop_exit
      _

</llo_original>
